<compile_context>
chip_gen: v5e
topology: v5e:2x2
jax: 0.10.0
libtpu: 0.0.40
codegen_flags: <defaults>
</compile_context>

<pallas_src>
import functools

import jax
import jax.numpy as jnp
from jax import lax
from jax.experimental import pallas as pl
from jax.experimental.pallas import tpu as pltpu


def _aa_to_rot_elems(x, y, z):
    """Axis-angle components -> 9 row-major rotation entries (same shape as x).

    Matches pytorch3d axis_angle_to_matrix (axis-angle -> quaternion -> matrix),
    including the small-angle Taylor branch. Divisions kept exact (no approx
    reciprocal) so results match the reference to < 1e-5."""
    angle = jnp.sqrt(x * x + y * y + z * z)
    half = 0.5 * angle
    eps = 1e-6
    small = jnp.abs(angle) < eps
    safe_angle = jnp.where(small, jnp.ones_like(angle), angle)
    sin_half_over_angle = jnp.where(
        small, 0.5 - (angle * angle) / 48.0, jnp.sin(half) / safe_angle
    )
    qw = jnp.cos(half)
    qx = x * sin_half_over_angle
    qy = y * sin_half_over_angle
    qz = z * sin_half_over_angle
    two_s = 2.0 / (qw * qw + qx * qx + qy * qy + qz * qz)
    r00 = 1.0 - two_s * (qy * qy + qz * qz)
    r01 = two_s * (qx * qy - qz * qw)
    r02 = two_s * (qx * qz + qy * qw)
    r10 = two_s * (qx * qy + qz * qw)
    r11 = 1.0 - two_s * (qx * qx + qz * qz)
    r12 = two_s * (qy * qz - qx * qw)
    r20 = two_s * (qx * qz - qy * qw)
    r21 = two_s * (qy * qz + qx * qw)
    r22 = 1.0 - two_s * (qx * qx + qy * qy)
    return (r00, r01, r02, r10, r11, r12, r20, r21, r22)


def _compute_and_store(x, y, z, tx, ty, tz, b, out_ref):
    """Shared body: frameTbase(x,y,z,t) @ base -> direct stores into (B, 16).

    x..tz are (B, 1) columns (batch on sublanes); b is a list of 12 scalars
    holding the row-major 3x4 block [Rb*s | bt] of the base transform."""
    R = _aa_to_rot_elems(x, y, z)          # 9 x (B, 1)
    t = (tx, ty, tz)

    def Be(i, j):
        return b[4 * i + j]

    # One direct store per output entry (no sublane concatenate / XLU packing).
    for i in range(3):
        Ri0, Ri1, Ri2 = R[3 * i + 0], R[3 * i + 1], R[3 * i + 2]
        for j in range(3):
            c = 4 * i + j
            out_ref[:, c:c + 1] = Ri0 * Be(0, j) + Ri1 * Be(1, j) + Ri2 * Be(2, j)
        c = 4 * i + 3
        out_ref[:, c:c + 1] = (Ri0 * Be(0, 3) + Ri1 * Be(1, 3) + Ri2 * Be(2, 3)
                               + t[i])
    # Constant bottom row [0, 0, 0, 1] as one (B, 4) block store (iota compare,
    # no packing moves).
    batch = x.shape[0]
    col = lax.broadcasted_iota(jnp.int32, (batch, 4), 1)
    out_ref[:, 12:16] = (col == 3).astype(jnp.float32)


def _relpose_kernel(ids_ref, params_ref, out_ref, *, num_frames):
    """Small-F path: fused gather with scalar operands read from SMEM.

    ids_ref    : (B, 1) int32 VMEM   — camera ids, batch on sublanes
    params_ref : (6F + 12,) f32 SMEM — [r table (3F) | t table (3F) | base12]
    out_ref    : (B, 16) f32 VMEM    — row-major-flattened 4x4 per batch element
    """
    ids = ids_ref[...]                                   # (B, 1)
    batch = ids.shape[0]
    zeros = jnp.zeros((batch, 1), jnp.float32)
    gx = gy = gz = zeros
    tx = ty = tz = zeros
    t_off = 3 * num_frames
    # F is a small compile-time constant; each select uses a free scalar-operand
    # broadcast from SMEM (no single-lane vreg splats, no sublane slicing).
    for f in range(num_frames):
        m = ids == f                                     # (B, 1) mask
        gx = jnp.where(m, params_ref[3 * f + 0], gx)
        gy = jnp.where(m, params_ref[3 * f + 1], gy)
        gz = jnp.where(m, params_ref[3 * f + 2], gz)
        tx = jnp.where(m, params_ref[t_off + 3 * f + 0], tx)
        ty = jnp.where(m, params_ref[t_off + 3 * f + 1], ty)
        tz = jnp.where(m, params_ref[t_off + 3 * f + 2], tz)

    base_off = 6 * num_frames
    b = [params_ref[base_off + k] for k in range(12)]
    _compute_and_store(gx, gy, gz, tx, ty, tz, b, out_ref)


def _relpose_kernel_pregathered(g_ref, base_ref, out_ref):
    """Large-F fallback: wrapper already gathered (B, 6) = [r | t] rows."""
    g = g_ref[...]                                       # (B, 6)
    x, y, z = g[:, 0:1], g[:, 1:2], g[:, 2:3]
    tx, ty, tz = g[:, 3:4], g[:, 4:5], g[:, 5:6]
    b = [base_ref[k] for k in range(12)]
    _compute_and_store(x, y, z, tx, ty, tz, b, out_ref)


def rel_pose_net_forward(cam_id, r_param, t_param, base_r, base_t, base_s,
                         *, gather_in_kernel=None):
    """Pallas-backed RelPoseNet.forward(cam_id) -> (B, 4, 4) float32."""
    batch = cam_id.shape[0]
    num_frames = r_param.shape[0]

    # Batch-invariant base transform hoisted out of the kernel: 12 numbers
    # [Rb * s | bt], row-major 3x4, passed to the kernel as SMEM scalars.
    e = _aa_to_rot_elems(base_r[:, 0:1], base_r[:, 1:2], base_r[:, 2:3])  # 9 x (1,1)
    s = base_s[0, 0]
    base12 = jnp.stack(
        [e[0][0, 0] * s, e[1][0, 0] * s, e[2][0, 0] * s, base_t[0, 0],
         e[3][0, 0] * s, e[4][0, 0] * s, e[5][0, 0] * s, base_t[0, 1],
         e[6][0, 0] * s, e[7][0, 0] * s, e[8][0, 0] * s, base_t[0, 2]]
    ).astype(jnp.float32)                                 # (12,)

    ids = cam_id.astype(jnp.int32).reshape(batch, 1)      # (B, 1), batch on sublanes

    if gather_in_kernel is None:
        gather_in_kernel = num_frames <= 32

    vmem = pl.BlockSpec(memory_space=pltpu.MemorySpace.VMEM)
    smem = pl.BlockSpec(memory_space=pltpu.MemorySpace.SMEM)
    out_shape = jax.ShapeDtypeStruct((batch, 16), jnp.float32)

    if gather_in_kernel:
        # One flat SMEM buffer: [r table | t table | base12] -> 2 input DMAs total.
        params = jnp.concatenate(
            [r_param.reshape(-1), t_param.reshape(-1), base12]
        ).astype(jnp.float32)                             # (6F + 12,)
        out_flat = pl.pallas_call(
            functools.partial(_relpose_kernel, num_frames=num_frames),
            out_shape=out_shape,
            in_specs=[vmem, smem],
            out_specs=vmem,
        )(ids, params)
    else:
        # Large-F path: single XLA gather in the wrapper, O(1)-in-F kernel.
        gathered = jnp.concatenate([r_param, t_param], axis=1).astype(jnp.float32)
        gathered = gathered[cam_id.astype(jnp.int32)]     # (B, 6)
        out_flat = pl.pallas_call(
            _relpose_kernel_pregathered,
            out_shape=out_shape,
            in_specs=[vmem, smem],
            out_specs=vmem,
        )(gathered, base12)

    # (B, 16) -> (B, 4, 4): contiguous reshape, no transpose HLO.
    return out_flat.reshape(batch, 4, 4)


# ---------------------------- pure-JAX reference ----------------------------
def _reference(cam_id, r_param, t_param, base_r, base_t, base_s):
    r = r_param[cam_id]                                   # (B, 3)
    t = t_param[cam_id]                                   # (B, 3)
    e = _aa_to_rot_elems(r[:, 0:1], r[:, 1:2], r[:, 2:3])
    Rf = jnp.stack([v[:, 0] for v in e], axis=-1).reshape(-1, 3, 3)
    batch = r.shape[0]
    bottom = jnp.tile(jnp.array([[[0.0, 0.0, 0.0, 1.0]]], jnp.float32),
                      (batch, 1, 1))
    frame = jnp.concatenate(
        [jnp.concatenate([Rf, t[:, :, None]], axis=-1), bottom], axis=-2
    )                                                     # (B, 4, 4)
    eb = _aa_to_rot_elems(base_r[:, 0:1], base_r[:, 1:2], base_r[:, 2:3])
    Rb = jnp.stack([v[0, 0] for v in eb]).reshape(3, 3)
    base_top = jnp.concatenate([Rb * base_s[0, 0], base_t.T], axis=-1)  # (3, 4)
    base = jnp.concatenate(
        [base_top, jnp.array([[0.0, 0.0, 0.0, 1.0]], jnp.float32)], axis=0
    )                                                     # (4, 4)
    return frame @ base[None]


if __name__ == "__main__":
    key = jax.random.PRNGKey(0)
    num_frames = 8
    batch = 8
    k1, k2, k3, k4, k5, k6 = jax.random.split(key, 6)

    # Deterministic synthetic parameters (shapes match the nn.Parameters).
    base_r = 0.3 * jax.random.normal(k1, (1, 3), jnp.float32)            # axis-angle
    base_t = jax.random.normal(k2, (1, 3), jnp.float32)                  # translation
    base_s = jnp.abs(jax.random.normal(k3, (1, 1), jnp.float32)) + 0.5   # scale
    r_param = 0.2 * jax.random.normal(k4, (num_frames, 3), jnp.float32)
    t_param = 0.1 * jax.random.normal(k5, (num_frames, 3), jnp.float32)
    cam_id = jax.random.randint(k6, (batch,), 0, num_frames)

    ref = _reference(cam_id, r_param, t_param, base_r, base_t, base_s)

    # Primary path: fused SMEM gather inside the kernel (F <= 32).
    out = rel_pose_net_forward(cam_id, r_param, t_param, base_r, base_t, base_s)
    out = jax.block_until_ready(out)
    assert out.shape == (batch, 4, 4)
    assert jnp.allclose(out, ref, atol=1e-5, rtol=1e-5), "mismatch (fused gather)"

    # Large-F fallback path (wrapper gather) exercised explicitly.
    out_fb = rel_pose_net_forward(cam_id, r_param, t_param, base_r, base_t,
                                  base_s, gather_in_kernel=False)
    out_fb = jax.block_until_ready(out_fb)
    assert jnp.allclose(out_fb, ref, atol=1e-5, rtol=1e-5), "mismatch (pregathered)"

    print("KERNEL_OK")
</pallas_src>

<mosaic_0001>
module attributes {stable_mosaic.version = 11 : i64} {
  func.func @_relpose_kernel(%arg0: memref<8x1xi32, #tpu.memory_space<vmem>>, %arg1: memref<60xf32, #tpu.memory_space<smem>>, %arg2: memref<8x16xf32, #tpu.memory_space<vmem>>) attributes {dimension_semantics = [], scalar_prefetch = 0 : i64, scratch_operands = 0 : i64, tpu.core_type = #tpu.core_type<tc>} {
    %c0 = arith.constant 0 : index
    %c0_0 = arith.constant 0 : index
    %0 = vector.load %arg0[%c0, %c0_0] : memref<8x1xi32, #tpu.memory_space<vmem>>, vector<8x1xi32>
    %cst = arith.constant 0.000000e+00 : f32
    %1 = vector.broadcast %cst : f32 to vector<8x1xf32>
    %c0_i32 = arith.constant 0 : i32
    %2 = vector.broadcast %c0_i32 : i32 to vector<8x1xi32>
    %3 = arith.cmpi eq, %0, %2 : vector<8x1xi32>
    %c0_1 = arith.constant 0 : index
    %4 = memref.load %arg1[%c0_1] : memref<60xf32, #tpu.memory_space<smem>>
    %5 = vector.broadcast %4 : f32 to vector<8x1xf32>
    %6 = arith.select %3, %5, %1 : vector<8x1xi1>, vector<8x1xf32>
    %c1 = arith.constant 1 : index
    %7 = memref.load %arg1[%c1] : memref<60xf32, #tpu.memory_space<smem>>
    %8 = vector.broadcast %7 : f32 to vector<8x1xf32>
    %9 = arith.select %3, %8, %1 : vector<8x1xi1>, vector<8x1xf32>
    %c2 = arith.constant 2 : index
    %10 = memref.load %arg1[%c2] : memref<60xf32, #tpu.memory_space<smem>>
    %11 = vector.broadcast %10 : f32 to vector<8x1xf32>
    %12 = arith.select %3, %11, %1 : vector<8x1xi1>, vector<8x1xf32>
    %c24 = arith.constant 24 : index
    %13 = memref.load %arg1[%c24] : memref<60xf32, #tpu.memory_space<smem>>
    %14 = vector.broadcast %13 : f32 to vector<8x1xf32>
    %15 = arith.select %3, %14, %1 : vector<8x1xi1>, vector<8x1xf32>
    %c25 = arith.constant 25 : index
    %16 = memref.load %arg1[%c25] : memref<60xf32, #tpu.memory_space<smem>>
    %17 = vector.broadcast %16 : f32 to vector<8x1xf32>
    %18 = arith.select %3, %17, %1 : vector<8x1xi1>, vector<8x1xf32>
    %c26 = arith.constant 26 : index
    %19 = memref.load %arg1[%c26] : memref<60xf32, #tpu.memory_space<smem>>
    %20 = vector.broadcast %19 : f32 to vector<8x1xf32>
    %21 = arith.select %3, %20, %1 : vector<8x1xi1>, vector<8x1xf32>
    %c1_i32 = arith.constant 1 : i32
    %22 = vector.broadcast %c1_i32 : i32 to vector<8x1xi32>
    %23 = arith.cmpi eq, %0, %22 : vector<8x1xi32>
    %c3 = arith.constant 3 : index
    %24 = memref.load %arg1[%c3] : memref<60xf32, #tpu.memory_space<smem>>
    %25 = vector.broadcast %24 : f32 to vector<8x1xf32>
    %26 = arith.select %23, %25, %6 : vector<8x1xi1>, vector<8x1xf32>
    %c4 = arith.constant 4 : index
    %27 = memref.load %arg1[%c4] : memref<60xf32, #tpu.memory_space<smem>>
    %28 = vector.broadcast %27 : f32 to vector<8x1xf32>
    %29 = arith.select %23, %28, %9 : vector<8x1xi1>, vector<8x1xf32>
    %c5 = arith.constant 5 : index
    %30 = memref.load %arg1[%c5] : memref<60xf32, #tpu.memory_space<smem>>
    %31 = vector.broadcast %30 : f32 to vector<8x1xf32>
    %32 = arith.select %23, %31, %12 : vector<8x1xi1>, vector<8x1xf32>
    %c27 = arith.constant 27 : index
    %33 = memref.load %arg1[%c27] : memref<60xf32, #tpu.memory_space<smem>>
    %34 = vector.broadcast %33 : f32 to vector<8x1xf32>
    %35 = arith.select %23, %34, %15 : vector<8x1xi1>, vector<8x1xf32>
    %c28 = arith.constant 28 : index
    %36 = memref.load %arg1[%c28] : memref<60xf32, #tpu.memory_space<smem>>
    %37 = vector.broadcast %36 : f32 to vector<8x1xf32>
    %38 = arith.select %23, %37, %18 : vector<8x1xi1>, vector<8x1xf32>
    %c29 = arith.constant 29 : index
    %39 = memref.load %arg1[%c29] : memref<60xf32, #tpu.memory_space<smem>>
    %40 = vector.broadcast %39 : f32 to vector<8x1xf32>
    %41 = arith.select %23, %40, %21 : vector<8x1xi1>, vector<8x1xf32>
    %c2_i32 = arith.constant 2 : i32
    %42 = vector.broadcast %c2_i32 : i32 to vector<8x1xi32>
    %43 = arith.cmpi eq, %0, %42 : vector<8x1xi32>
    %c6 = arith.constant 6 : index
    %44 = memref.load %arg1[%c6] : memref<60xf32, #tpu.memory_space<smem>>
    %45 = vector.broadcast %44 : f32 to vector<8x1xf32>
    %46 = arith.select %43, %45, %26 : vector<8x1xi1>, vector<8x1xf32>
    %c7 = arith.constant 7 : index
    %47 = memref.load %arg1[%c7] : memref<60xf32, #tpu.memory_space<smem>>
    %48 = vector.broadcast %47 : f32 to vector<8x1xf32>
    %49 = arith.select %43, %48, %29 : vector<8x1xi1>, vector<8x1xf32>
    %c8 = arith.constant 8 : index
    %50 = memref.load %arg1[%c8] : memref<60xf32, #tpu.memory_space<smem>>
    %51 = vector.broadcast %50 : f32 to vector<8x1xf32>
    %52 = arith.select %43, %51, %32 : vector<8x1xi1>, vector<8x1xf32>
    %c30 = arith.constant 30 : index
    %53 = memref.load %arg1[%c30] : memref<60xf32, #tpu.memory_space<smem>>
    %54 = vector.broadcast %53 : f32 to vector<8x1xf32>
    %55 = arith.select %43, %54, %35 : vector<8x1xi1>, vector<8x1xf32>
    %c31 = arith.constant 31 : index
    %56 = memref.load %arg1[%c31] : memref<60xf32, #tpu.memory_space<smem>>
    %57 = vector.broadcast %56 : f32 to vector<8x1xf32>
    %58 = arith.select %43, %57, %38 : vector<8x1xi1>, vector<8x1xf32>
    %c32 = arith.constant 32 : index
    %59 = memref.load %arg1[%c32] : memref<60xf32, #tpu.memory_space<smem>>
    %60 = vector.broadcast %59 : f32 to vector<8x1xf32>
    %61 = arith.select %43, %60, %41 : vector<8x1xi1>, vector<8x1xf32>
    %c3_i32 = arith.constant 3 : i32
    %62 = vector.broadcast %c3_i32 : i32 to vector<8x1xi32>
    %63 = arith.cmpi eq, %0, %62 : vector<8x1xi32>
    %c9 = arith.constant 9 : index
    %64 = memref.load %arg1[%c9] : memref<60xf32, #tpu.memory_space<smem>>
    %65 = vector.broadcast %64 : f32 to vector<8x1xf32>
    %66 = arith.select %63, %65, %46 : vector<8x1xi1>, vector<8x1xf32>
    %c10 = arith.constant 10 : index
    %67 = memref.load %arg1[%c10] : memref<60xf32, #tpu.memory_space<smem>>
    %68 = vector.broadcast %67 : f32 to vector<8x1xf32>
    %69 = arith.select %63, %68, %49 : vector<8x1xi1>, vector<8x1xf32>
    %c11 = arith.constant 11 : index
    %70 = memref.load %arg1[%c11] : memref<60xf32, #tpu.memory_space<smem>>
    %71 = vector.broadcast %70 : f32 to vector<8x1xf32>
    %72 = arith.select %63, %71, %52 : vector<8x1xi1>, vector<8x1xf32>
    %c33 = arith.constant 33 : index
    %73 = memref.load %arg1[%c33] : memref<60xf32, #tpu.memory_space<smem>>
    %74 = vector.broadcast %73 : f32 to vector<8x1xf32>
    %75 = arith.select %63, %74, %55 : vector<8x1xi1>, vector<8x1xf32>
    %c34 = arith.constant 34 : index
    %76 = memref.load %arg1[%c34] : memref<60xf32, #tpu.memory_space<smem>>
    %77 = vector.broadcast %76 : f32 to vector<8x1xf32>
    %78 = arith.select %63, %77, %58 : vector<8x1xi1>, vector<8x1xf32>
    %c35 = arith.constant 35 : index
    %79 = memref.load %arg1[%c35] : memref<60xf32, #tpu.memory_space<smem>>
    %80 = vector.broadcast %79 : f32 to vector<8x1xf32>
    %81 = arith.select %63, %80, %61 : vector<8x1xi1>, vector<8x1xf32>
    %c4_i32 = arith.constant 4 : i32
    %82 = vector.broadcast %c4_i32 : i32 to vector<8x1xi32>
    %83 = arith.cmpi eq, %0, %82 : vector<8x1xi32>
    %c12 = arith.constant 12 : index
    %84 = memref.load %arg1[%c12] : memref<60xf32, #tpu.memory_space<smem>>
    %85 = vector.broadcast %84 : f32 to vector<8x1xf32>
    %86 = arith.select %83, %85, %66 : vector<8x1xi1>, vector<8x1xf32>
    %c13 = arith.constant 13 : index
    %87 = memref.load %arg1[%c13] : memref<60xf32, #tpu.memory_space<smem>>
    %88 = vector.broadcast %87 : f32 to vector<8x1xf32>
    %89 = arith.select %83, %88, %69 : vector<8x1xi1>, vector<8x1xf32>
    %c14 = arith.constant 14 : index
    %90 = memref.load %arg1[%c14] : memref<60xf32, #tpu.memory_space<smem>>
    %91 = vector.broadcast %90 : f32 to vector<8x1xf32>
    %92 = arith.select %83, %91, %72 : vector<8x1xi1>, vector<8x1xf32>
    %c36 = arith.constant 36 : index
    %93 = memref.load %arg1[%c36] : memref<60xf32, #tpu.memory_space<smem>>
    %94 = vector.broadcast %93 : f32 to vector<8x1xf32>
    %95 = arith.select %83, %94, %75 : vector<8x1xi1>, vector<8x1xf32>
    %c37 = arith.constant 37 : index
    %96 = memref.load %arg1[%c37] : memref<60xf32, #tpu.memory_space<smem>>
    %97 = vector.broadcast %96 : f32 to vector<8x1xf32>
    %98 = arith.select %83, %97, %78 : vector<8x1xi1>, vector<8x1xf32>
    %c38 = arith.constant 38 : index
    %99 = memref.load %arg1[%c38] : memref<60xf32, #tpu.memory_space<smem>>
    %100 = vector.broadcast %99 : f32 to vector<8x1xf32>
    %101 = arith.select %83, %100, %81 : vector<8x1xi1>, vector<8x1xf32>
    %c5_i32 = arith.constant 5 : i32
    %102 = vector.broadcast %c5_i32 : i32 to vector<8x1xi32>
    %103 = arith.cmpi eq, %0, %102 : vector<8x1xi32>
    %c15 = arith.constant 15 : index
    %104 = memref.load %arg1[%c15] : memref<60xf32, #tpu.memory_space<smem>>
    %105 = vector.broadcast %104 : f32 to vector<8x1xf32>
    %106 = arith.select %103, %105, %86 : vector<8x1xi1>, vector<8x1xf32>
    %c16 = arith.constant 16 : index
    %107 = memref.load %arg1[%c16] : memref<60xf32, #tpu.memory_space<smem>>
    %108 = vector.broadcast %107 : f32 to vector<8x1xf32>
    %109 = arith.select %103, %108, %89 : vector<8x1xi1>, vector<8x1xf32>
    %c17 = arith.constant 17 : index
    %110 = memref.load %arg1[%c17] : memref<60xf32, #tpu.memory_space<smem>>
    %111 = vector.broadcast %110 : f32 to vector<8x1xf32>
    %112 = arith.select %103, %111, %92 : vector<8x1xi1>, vector<8x1xf32>
    %c39 = arith.constant 39 : index
    %113 = memref.load %arg1[%c39] : memref<60xf32, #tpu.memory_space<smem>>
    %114 = vector.broadcast %113 : f32 to vector<8x1xf32>
    %115 = arith.select %103, %114, %95 : vector<8x1xi1>, vector<8x1xf32>
    %c40 = arith.constant 40 : index
    %116 = memref.load %arg1[%c40] : memref<60xf32, #tpu.memory_space<smem>>
    %117 = vector.broadcast %116 : f32 to vector<8x1xf32>
    %118 = arith.select %103, %117, %98 : vector<8x1xi1>, vector<8x1xf32>
    %c41 = arith.constant 41 : index
    %119 = memref.load %arg1[%c41] : memref<60xf32, #tpu.memory_space<smem>>
    %120 = vector.broadcast %119 : f32 to vector<8x1xf32>
    %121 = arith.select %103, %120, %101 : vector<8x1xi1>, vector<8x1xf32>
    %c6_i32 = arith.constant 6 : i32
    %122 = vector.broadcast %c6_i32 : i32 to vector<8x1xi32>
    %123 = arith.cmpi eq, %0, %122 : vector<8x1xi32>
    %c18 = arith.constant 18 : index
    %124 = memref.load %arg1[%c18] : memref<60xf32, #tpu.memory_space<smem>>
    %125 = vector.broadcast %124 : f32 to vector<8x1xf32>
    %126 = arith.select %123, %125, %106 : vector<8x1xi1>, vector<8x1xf32>
    %c19 = arith.constant 19 : index
    %127 = memref.load %arg1[%c19] : memref<60xf32, #tpu.memory_space<smem>>
    %128 = vector.broadcast %127 : f32 to vector<8x1xf32>
    %129 = arith.select %123, %128, %109 : vector<8x1xi1>, vector<8x1xf32>
    %c20 = arith.constant 20 : index
    %130 = memref.load %arg1[%c20] : memref<60xf32, #tpu.memory_space<smem>>
    %131 = vector.broadcast %130 : f32 to vector<8x1xf32>
    %132 = arith.select %123, %131, %112 : vector<8x1xi1>, vector<8x1xf32>
    %c42 = arith.constant 42 : index
    %133 = memref.load %arg1[%c42] : memref<60xf32, #tpu.memory_space<smem>>
    %134 = vector.broadcast %133 : f32 to vector<8x1xf32>
    %135 = arith.select %123, %134, %115 : vector<8x1xi1>, vector<8x1xf32>
    %c43 = arith.constant 43 : index
    %136 = memref.load %arg1[%c43] : memref<60xf32, #tpu.memory_space<smem>>
    %137 = vector.broadcast %136 : f32 to vector<8x1xf32>
    %138 = arith.select %123, %137, %118 : vector<8x1xi1>, vector<8x1xf32>
    %c44 = arith.constant 44 : index
    %139 = memref.load %arg1[%c44] : memref<60xf32, #tpu.memory_space<smem>>
    %140 = vector.broadcast %139 : f32 to vector<8x1xf32>
    %141 = arith.select %123, %140, %121 : vector<8x1xi1>, vector<8x1xf32>
    %c7_i32 = arith.constant 7 : i32
    %142 = vector.broadcast %c7_i32 : i32 to vector<8x1xi32>
    %143 = arith.cmpi eq, %0, %142 : vector<8x1xi32>
    %c21 = arith.constant 21 : index
    %144 = memref.load %arg1[%c21] : memref<60xf32, #tpu.memory_space<smem>>
    %145 = vector.broadcast %144 : f32 to vector<8x1xf32>
    %146 = arith.select %143, %145, %126 : vector<8x1xi1>, vector<8x1xf32>
    %c22 = arith.constant 22 : index
    %147 = memref.load %arg1[%c22] : memref<60xf32, #tpu.memory_space<smem>>
    %148 = vector.broadcast %147 : f32 to vector<8x1xf32>
    %149 = arith.select %143, %148, %129 : vector<8x1xi1>, vector<8x1xf32>
    %c23 = arith.constant 23 : index
    %150 = memref.load %arg1[%c23] : memref<60xf32, #tpu.memory_space<smem>>
    %151 = vector.broadcast %150 : f32 to vector<8x1xf32>
    %152 = arith.select %143, %151, %132 : vector<8x1xi1>, vector<8x1xf32>
    %c45 = arith.constant 45 : index
    %153 = memref.load %arg1[%c45] : memref<60xf32, #tpu.memory_space<smem>>
    %154 = vector.broadcast %153 : f32 to vector<8x1xf32>
    %155 = arith.select %143, %154, %135 : vector<8x1xi1>, vector<8x1xf32>
    %c46 = arith.constant 46 : index
    %156 = memref.load %arg1[%c46] : memref<60xf32, #tpu.memory_space<smem>>
    %157 = vector.broadcast %156 : f32 to vector<8x1xf32>
    %158 = arith.select %143, %157, %138 : vector<8x1xi1>, vector<8x1xf32>
    %c47 = arith.constant 47 : index
    %159 = memref.load %arg1[%c47] : memref<60xf32, #tpu.memory_space<smem>>
    %160 = vector.broadcast %159 : f32 to vector<8x1xf32>
    %161 = arith.select %143, %160, %141 : vector<8x1xi1>, vector<8x1xf32>
    %c48 = arith.constant 48 : index
    %162 = memref.load %arg1[%c48] : memref<60xf32, #tpu.memory_space<smem>>
    %c49 = arith.constant 49 : index
    %163 = memref.load %arg1[%c49] : memref<60xf32, #tpu.memory_space<smem>>
    %c50 = arith.constant 50 : index
    %164 = memref.load %arg1[%c50] : memref<60xf32, #tpu.memory_space<smem>>
    %c51 = arith.constant 51 : index
    %165 = memref.load %arg1[%c51] : memref<60xf32, #tpu.memory_space<smem>>
    %c52 = arith.constant 52 : index
    %166 = memref.load %arg1[%c52] : memref<60xf32, #tpu.memory_space<smem>>
    %c53 = arith.constant 53 : index
    %167 = memref.load %arg1[%c53] : memref<60xf32, #tpu.memory_space<smem>>
    %c54 = arith.constant 54 : index
    %168 = memref.load %arg1[%c54] : memref<60xf32, #tpu.memory_space<smem>>
    %c55 = arith.constant 55 : index
    %169 = memref.load %arg1[%c55] : memref<60xf32, #tpu.memory_space<smem>>
    %c56 = arith.constant 56 : index
    %170 = memref.load %arg1[%c56] : memref<60xf32, #tpu.memory_space<smem>>
    %c57 = arith.constant 57 : index
    %171 = memref.load %arg1[%c57] : memref<60xf32, #tpu.memory_space<smem>>
    %c58 = arith.constant 58 : index
    %172 = memref.load %arg1[%c58] : memref<60xf32, #tpu.memory_space<smem>>
    %c59 = arith.constant 59 : index
    %173 = memref.load %arg1[%c59] : memref<60xf32, #tpu.memory_space<smem>>
    %174 = arith.mulf %146, %146 : vector<8x1xf32>
    %175 = arith.mulf %149, %149 : vector<8x1xf32>
    %176 = arith.addf %174, %175 : vector<8x1xf32>
    %177 = arith.mulf %152, %152 : vector<8x1xf32>
    %178 = arith.addf %176, %177 : vector<8x1xf32>
    %179 = math.sqrt %178 : vector<8x1xf32>
    %cst_2 = arith.constant 5.000000e-01 : f32
    %180 = vector.broadcast %cst_2 : f32 to vector<8x1xf32>
    %181 = arith.mulf %180, %179 : vector<8x1xf32>
    %182 = math.absf %179 : vector<8x1xf32>
    %cst_3 = arith.constant 9.99999997E-7 : f32
    %183 = vector.broadcast %cst_3 : f32 to vector<8x1xf32>
    %184 = arith.cmpf olt, %182, %183 : vector<8x1xf32>
    %cst_4 = arith.constant 1.000000e+00 : f32
    %185 = vector.broadcast %cst_4 : f32 to vector<8x1xf32>
    %186 = arith.select %184, %185, %179 : vector<8x1xi1>, vector<8x1xf32>
    %187 = arith.mulf %179, %179 : vector<8x1xf32>
    %cst_5 = arith.constant 4.800000e+01 : f32
    %188 = vector.broadcast %cst_5 : f32 to vector<8x1xf32>
    %189 = arith.divf %187, %188 : vector<8x1xf32>
    %cst_6 = arith.constant 5.000000e-01 : f32
    %190 = vector.broadcast %cst_6 : f32 to vector<8x1xf32>
    %191 = arith.subf %190, %189 : vector<8x1xf32>
    %192 = math.sin %181 : vector<8x1xf32>
    %193 = arith.divf %192, %186 : vector<8x1xf32>
    %194 = arith.select %184, %191, %193 : vector<8x1xi1>, vector<8x1xf32>
    %195 = math.cos %181 : vector<8x1xf32>
    %196 = arith.mulf %146, %194 : vector<8x1xf32>
    %197 = arith.mulf %149, %194 : vector<8x1xf32>
    %198 = arith.mulf %152, %194 : vector<8x1xf32>
    %199 = arith.mulf %195, %195 : vector<8x1xf32>
    %200 = arith.mulf %196, %196 : vector<8x1xf32>
    %201 = arith.addf %199, %200 : vector<8x1xf32>
    %202 = arith.mulf %197, %197 : vector<8x1xf32>
    %203 = arith.addf %201, %202 : vector<8x1xf32>
    %204 = arith.mulf %198, %198 : vector<8x1xf32>
    %205 = arith.addf %203, %204 : vector<8x1xf32>
    %cst_7 = arith.constant 2.000000e+00 : f32
    %206 = vector.broadcast %cst_7 : f32 to vector<8x1xf32>
    %207 = arith.divf %206, %205 : vector<8x1xf32>
    %208 = arith.mulf %197, %197 : vector<8x1xf32>
    %209 = arith.mulf %198, %198 : vector<8x1xf32>
    %210 = arith.addf %208, %209 : vector<8x1xf32>
    %211 = arith.mulf %207, %210 : vector<8x1xf32>
    %cst_8 = arith.constant 1.000000e+00 : f32
    %212 = vector.broadcast %cst_8 : f32 to vector<8x1xf32>
    %213 = arith.subf %212, %211 : vector<8x1xf32>
    %214 = arith.mulf %196, %197 : vector<8x1xf32>
    %215 = arith.mulf %198, %195 : vector<8x1xf32>
    %216 = arith.subf %214, %215 : vector<8x1xf32>
    %217 = arith.mulf %207, %216 : vector<8x1xf32>
    %218 = arith.mulf %196, %198 : vector<8x1xf32>
    %219 = arith.mulf %197, %195 : vector<8x1xf32>
    %220 = arith.addf %218, %219 : vector<8x1xf32>
    %221 = arith.mulf %207, %220 : vector<8x1xf32>
    %222 = arith.mulf %196, %197 : vector<8x1xf32>
    %223 = arith.mulf %198, %195 : vector<8x1xf32>
    %224 = arith.addf %222, %223 : vector<8x1xf32>
    %225 = arith.mulf %207, %224 : vector<8x1xf32>
    %226 = arith.mulf %196, %196 : vector<8x1xf32>
    %227 = arith.mulf %198, %198 : vector<8x1xf32>
    %228 = arith.addf %226, %227 : vector<8x1xf32>
    %229 = arith.mulf %207, %228 : vector<8x1xf32>
    %cst_9 = arith.constant 1.000000e+00 : f32
    %230 = vector.broadcast %cst_9 : f32 to vector<8x1xf32>
    %231 = arith.subf %230, %229 : vector<8x1xf32>
    %232 = arith.mulf %197, %198 : vector<8x1xf32>
    %233 = arith.mulf %196, %195 : vector<8x1xf32>
    %234 = arith.subf %232, %233 : vector<8x1xf32>
    %235 = arith.mulf %207, %234 : vector<8x1xf32>
    %236 = arith.mulf %196, %198 : vector<8x1xf32>
    %237 = arith.mulf %197, %195 : vector<8x1xf32>
    %238 = arith.subf %236, %237 : vector<8x1xf32>
    %239 = arith.mulf %207, %238 : vector<8x1xf32>
    %240 = arith.mulf %197, %198 : vector<8x1xf32>
    %241 = arith.mulf %196, %195 : vector<8x1xf32>
    %242 = arith.addf %240, %241 : vector<8x1xf32>
    %243 = arith.mulf %207, %242 : vector<8x1xf32>
    %244 = arith.mulf %196, %196 : vector<8x1xf32>
    %245 = arith.mulf %197, %197 : vector<8x1xf32>
    %246 = arith.addf %244, %245 : vector<8x1xf32>
    %247 = arith.mulf %207, %246 : vector<8x1xf32>
    %cst_10 = arith.constant 1.000000e+00 : f32
    %248 = vector.broadcast %cst_10 : f32 to vector<8x1xf32>
    %249 = arith.subf %248, %247 : vector<8x1xf32>
    %250 = vector.broadcast %162 : f32 to vector<8x1xf32>
    %251 = arith.mulf %213, %250 : vector<8x1xf32>
    %252 = vector.broadcast %166 : f32 to vector<8x1xf32>
    %253 = arith.mulf %217, %252 : vector<8x1xf32>
    %254 = arith.addf %251, %253 : vector<8x1xf32>
    %255 = vector.broadcast %170 : f32 to vector<8x1xf32>
    %256 = arith.mulf %221, %255 : vector<8x1xf32>
    %257 = arith.addf %254, %256 : vector<8x1xf32>
    %c0_11 = arith.constant 0 : index
    %c0_12 = arith.constant 0 : index
    %258 = vector.load %arg2[%c0_11, %c0_12] : memref<8x16xf32, #tpu.memory_space<vmem>>, vector<8x1xf32>
    tpu.vector_store %arg2[%c0_11, %c0_12], %257 {strides = array<i32>} : memref<8x16xf32, #tpu.memory_space<vmem>>, vector<8x1xf32>,
    %259 = vector.broadcast %163 : f32 to vector<8x1xf32>
    %260 = arith.mulf %213, %259 : vector<8x1xf32>
    %261 = vector.broadcast %167 : f32 to vector<8x1xf32>
    %262 = arith.mulf %217, %261 : vector<8x1xf32>
    %263 = arith.addf %260, %262 : vector<8x1xf32>
    %264 = vector.broadcast %171 : f32 to vector<8x1xf32>
    %265 = arith.mulf %221, %264 : vector<8x1xf32>
    %266 = arith.addf %263, %265 : vector<8x1xf32>
    %c0_13 = arith.constant 0 : index
    %c1_14 = arith.constant 1 : index
    %267 = vector.load %arg2[%c0_13, %c1_14] : memref<8x16xf32, #tpu.memory_space<vmem>>, vector<8x1xf32>
    tpu.vector_store %arg2[%c0_13, %c1_14], %266 {strides = array<i32>} : memref<8x16xf32, #tpu.memory_space<vmem>>, vector<8x1xf32>,
    %268 = vector.broadcast %164 : f32 to vector<8x1xf32>
    %269 = arith.mulf %213, %268 : vector<8x1xf32>
    %270 = vector.broadcast %168 : f32 to vector<8x1xf32>
    %271 = arith.mulf %217, %270 : vector<8x1xf32>
    %272 = arith.addf %269, %271 : vector<8x1xf32>
    %273 = vector.broadcast %172 : f32 to vector<8x1xf32>
    %274 = arith.mulf %221, %273 : vector<8x1xf32>
    %275 = arith.addf %272, %274 : vector<8x1xf32>
    %c0_15 = arith.constant 0 : index
    %c2_16 = arith.constant 2 : index
    %276 = vector.load %arg2[%c0_15, %c2_16] : memref<8x16xf32, #tpu.memory_space<vmem>>, vector<8x1xf32>
    tpu.vector_store %arg2[%c0_15, %c2_16], %275 {strides = array<i32>} : memref<8x16xf32, #tpu.memory_space<vmem>>, vector<8x1xf32>,
    %277 = vector.broadcast %165 : f32 to vector<8x1xf32>
    %278 = arith.mulf %213, %277 : vector<8x1xf32>
    %279 = vector.broadcast %169 : f32 to vector<8x1xf32>
    %280 = arith.mulf %217, %279 : vector<8x1xf32>
    %281 = arith.addf %278, %280 : vector<8x1xf32>
    %282 = vector.broadcast %173 : f32 to vector<8x1xf32>
    %283 = arith.mulf %221, %282 : vector<8x1xf32>
    %284 = arith.addf %281, %283 : vector<8x1xf32>
    %285 = arith.addf %284, %155 : vector<8x1xf32>
    %c0_17 = arith.constant 0 : index
    %c3_18 = arith.constant 3 : index
    %286 = vector.load %arg2[%c0_17, %c3_18] : memref<8x16xf32, #tpu.memory_space<vmem>>, vector<8x1xf32>
    tpu.vector_store %arg2[%c0_17, %c3_18], %285 {strides = array<i32>} : memref<8x16xf32, #tpu.memory_space<vmem>>, vector<8x1xf32>,
    %287 = vector.broadcast %162 : f32 to vector<8x1xf32>
    %288 = arith.mulf %225, %287 : vector<8x1xf32>
    %289 = vector.broadcast %166 : f32 to vector<8x1xf32>
    %290 = arith.mulf %231, %289 : vector<8x1xf32>
    %291 = arith.addf %288, %290 : vector<8x1xf32>
    %292 = vector.broadcast %170 : f32 to vector<8x1xf32>
    %293 = arith.mulf %235, %292 : vector<8x1xf32>
    %294 = arith.addf %291, %293 : vector<8x1xf32>
    %c0_19 = arith.constant 0 : index
    %c4_20 = arith.constant 4 : index
    %295 = vector.load %arg2[%c0_19, %c4_20] : memref<8x16xf32, #tpu.memory_space<vmem>>, vector<8x1xf32>
    tpu.vector_store %arg2[%c0_19, %c4_20], %294 {strides = array<i32>} : memref<8x16xf32, #tpu.memory_space<vmem>>, vector<8x1xf32>,
    %296 = vector.broadcast %163 : f32 to vector<8x1xf32>
    %297 = arith.mulf %225, %296 : vector<8x1xf32>
    %298 = vector.broadcast %167 : f32 to vector<8x1xf32>
    %299 = arith.mulf %231, %298 : vector<8x1xf32>
    %300 = arith.addf %297, %299 : vector<8x1xf32>
    %301 = vector.broadcast %171 : f32 to vector<8x1xf32>
    %302 = arith.mulf %235, %301 : vector<8x1xf32>
    %303 = arith.addf %300, %302 : vector<8x1xf32>
    %c0_21 = arith.constant 0 : index
    %c5_22 = arith.constant 5 : index
    %304 = vector.load %arg2[%c0_21, %c5_22] : memref<8x16xf32, #tpu.memory_space<vmem>>, vector<8x1xf32>
    tpu.vector_store %arg2[%c0_21, %c5_22], %303 {strides = array<i32>} : memref<8x16xf32, #tpu.memory_space<vmem>>, vector<8x1xf32>,
    %305 = vector.broadcast %164 : f32 to vector<8x1xf32>
    %306 = arith.mulf %225, %305 : vector<8x1xf32>
    %307 = vector.broadcast %168 : f32 to vector<8x1xf32>
    %308 = arith.mulf %231, %307 : vector<8x1xf32>
    %309 = arith.addf %306, %308 : vector<8x1xf32>
    %310 = vector.broadcast %172 : f32 to vector<8x1xf32>
    %311 = arith.mulf %235, %310 : vector<8x1xf32>
    %312 = arith.addf %309, %311 : vector<8x1xf32>
    %c0_23 = arith.constant 0 : index
    %c6_24 = arith.constant 6 : index
    %313 = vector.load %arg2[%c0_23, %c6_24] : memref<8x16xf32, #tpu.memory_space<vmem>>, vector<8x1xf32>
    tpu.vector_store %arg2[%c0_23, %c6_24], %312 {strides = array<i32>} : memref<8x16xf32, #tpu.memory_space<vmem>>, vector<8x1xf32>,
    %314 = vector.broadcast %165 : f32 to vector<8x1xf32>
    %315 = arith.mulf %225, %314 : vector<8x1xf32>
    %316 = vector.broadcast %169 : f32 to vector<8x1xf32>
    %317 = arith.mulf %231, %316 : vector<8x1xf32>
    %318 = arith.addf %315, %317 : vector<8x1xf32>
    %319 = vector.broadcast %173 : f32 to vector<8x1xf32>
    %320 = arith.mulf %235, %319 : vector<8x1xf32>
    %321 = arith.addf %318, %320 : vector<8x1xf32>
    %322 = arith.addf %321, %158 : vector<8x1xf32>
    %c0_25 = arith.constant 0 : index
    %c7_26 = arith.constant 7 : index
    %323 = vector.load %arg2[%c0_25, %c7_26] : memref<8x16xf32, #tpu.memory_space<vmem>>, vector<8x1xf32>
    tpu.vector_store %arg2[%c0_25, %c7_26], %322 {strides = array<i32>} : memref<8x16xf32, #tpu.memory_space<vmem>>, vector<8x1xf32>,
    %324 = vector.broadcast %162 : f32 to vector<8x1xf32>
    %325 = arith.mulf %239, %324 : vector<8x1xf32>
    %326 = vector.broadcast %166 : f32 to vector<8x1xf32>
    %327 = arith.mulf %243, %326 : vector<8x1xf32>
    %328 = arith.addf %325, %327 : vector<8x1xf32>
    %329 = vector.broadcast %170 : f32 to vector<8x1xf32>
    %330 = arith.mulf %249, %329 : vector<8x1xf32>
    %331 = arith.addf %328, %330 : vector<8x1xf32>
    %c0_27 = arith.constant 0 : index
    %c8_28 = arith.constant 8 : index
    %332 = vector.load %arg2[%c0_27, %c8_28] : memref<8x16xf32, #tpu.memory_space<vmem>>, vector<8x1xf32>
    tpu.vector_store %arg2[%c0_27, %c8_28], %331 {strides = array<i32>} : memref<8x16xf32, #tpu.memory_space<vmem>>, vector<8x1xf32>,
    %333 = vector.broadcast %163 : f32 to vector<8x1xf32>
    %334 = arith.mulf %239, %333 : vector<8x1xf32>
    %335 = vector.broadcast %167 : f32 to vector<8x1xf32>
    %336 = arith.mulf %243, %335 : vector<8x1xf32>
    %337 = arith.addf %334, %336 : vector<8x1xf32>
    %338 = vector.broadcast %171 : f32 to vector<8x1xf32>
    %339 = arith.mulf %249, %338 : vector<8x1xf32>
    %340 = arith.addf %337, %339 : vector<8x1xf32>
    %c0_29 = arith.constant 0 : index
    %c9_30 = arith.constant 9 : index
    %341 = vector.load %arg2[%c0_29, %c9_30] : memref<8x16xf32, #tpu.memory_space<vmem>>, vector<8x1xf32>
    tpu.vector_store %arg2[%c0_29, %c9_30], %340 {strides = array<i32>} : memref<8x16xf32, #tpu.memory_space<vmem>>, vector<8x1xf32>,
    %342 = vector.broadcast %164 : f32 to vector<8x1xf32>
    %343 = arith.mulf %239, %342 : vector<8x1xf32>
    %344 = vector.broadcast %168 : f32 to vector<8x1xf32>
    %345 = arith.mulf %243, %344 : vector<8x1xf32>
    %346 = arith.addf %343, %345 : vector<8x1xf32>
    %347 = vector.broadcast %172 : f32 to vector<8x1xf32>
    %348 = arith.mulf %249, %347 : vector<8x1xf32>
    %349 = arith.addf %346, %348 : vector<8x1xf32>
    %c0_31 = arith.constant 0 : index
    %c10_32 = arith.constant 10 : index
    %350 = vector.load %arg2[%c0_31, %c10_32] : memref<8x16xf32, #tpu.memory_space<vmem>>, vector<8x1xf32>
    tpu.vector_store %arg2[%c0_31, %c10_32], %349 {strides = array<i32>} : memref<8x16xf32, #tpu.memory_space<vmem>>, vector<8x1xf32>,
    %351 = vector.broadcast %165 : f32 to vector<8x1xf32>
    %352 = arith.mulf %239, %351 : vector<8x1xf32>
    %353 = vector.broadcast %169 : f32 to vector<8x1xf32>
    %354 = arith.mulf %243, %353 : vector<8x1xf32>
    %355 = arith.addf %352, %354 : vector<8x1xf32>
    %356 = vector.broadcast %173 : f32 to vector<8x1xf32>
    %357 = arith.mulf %249, %356 : vector<8x1xf32>
    %358 = arith.addf %355, %357 : vector<8x1xf32>
    %359 = arith.addf %358, %161 : vector<8x1xf32>
    %c0_33 = arith.constant 0 : index
    %c11_34 = arith.constant 11 : index
    %360 = vector.load %arg2[%c0_33, %c11_34] : memref<8x16xf32, #tpu.memory_space<vmem>>, vector<8x1xf32>
    tpu.vector_store %arg2[%c0_33, %c11_34], %359 {strides = array<i32>} : memref<8x16xf32, #tpu.memory_space<vmem>>, vector<8x1xf32>,
    %361 = tpu.iota {dimensions = array<i32: 1>} : vector<8x4xi32>
    %c3_i32_35 = arith.constant 3 : i32
    %362 = vector.broadcast %c3_i32_35 : i32 to vector<8x4xi32>
    %363 = arith.cmpi eq, %361, %362 : vector<8x4xi32>
    %364 = arith.extui %363 : vector<8x4xi1> to vector<8x4xi32>
    %365 = arith.sitofp %364 : vector<8x4xi32> to vector<8x4xf32>
    %c0_36 = arith.constant 0 : index
    %c12_37 = arith.constant 12 : index
    %366 = vector.load %arg2[%c0_36, %c12_37] : memref<8x16xf32, #tpu.memory_space<vmem>>, vector<8x4xf32>
    tpu.vector_store %arg2[%c0_36, %c12_37], %365 {strides = array<i32>} : memref<8x16xf32, #tpu.memory_space<vmem>>, vector<8x4xf32>,
    return
  }
}

</mosaic_0001>

<llo_original>
// kernel: tpu_custom_call.1
$region0: #{tpu_custom_call.1}
  #allocation0 [shape = 'u32[]', space=smem, size = 0x4, offset = 0x4, fixed_abs, tag = 'smem constant byte address 0x4 - core index']
  #allocation1 [shape = 'u32[72,128]{1,0:T(1,128)}', space=vmem, size = 0x9000, scoped, tag = 'internal scratch']
  %s0 = inlined_call_operand.vmem [shape: s32[8,1], index: 0, kind: input, shape index: {}]
  %s1 = inlined_call_operand.vmem [shape: f32[60], index: 1, kind: input, shape index: {}]
  %s2 = inlined_call_operand.hbm [shape: f32[8,16], index: 2, kind: output, shape index: {}]
  %s3 = sld [smem:[#allocation0]]
  $region22: #{tpu_custom_call.1} parent=0
    _
  %s5 = ssub.s32 1, %s3
  %s6 = scalar_select 0, %s5, %s3
  $region1: #{tpu_custom_call.1} parent=0
    #allocation2 [shape = 'u8[512]{0}', space=smem, size = 0x200, scoped, tag = 'input window, operand 1, single buffered']
    #allocation3 [shape = 's32[1]{0}', space=sflag, size = 0x4, scoped, tag = 'scoped memory for tpu_custom_call.1']
    #allocation4 [shape = 's32[1]{0}', space=sflag, size = 0x4, scoped, tag = 'scoped memory for tpu_custom_call.1']
    #allocation5 [shape = 'u8[4096]{0}', space=vmem, size = 0x1000, scoped, tag = 'output window, operand 0, single buffered']
    %7 = vsyncpa [#allocation4], 0
    %8 = vsyncpa [#allocation3], 0
    // Predicated region
    $region2: #{tpu_custom_call.1} parent=1 // pred_check
      _
    $region3: #{tpu_custom_call.1} parent=1 // pred_check_branch
      %10 = sbr.rel (0) target = $region5
    $region4: #{tpu_custom_call.1} parent=1 // pred_region
      _
    $region5: #{tpu_custom_call.1} parent=1 // pred_fallthru
      _
    // Predicated region
    $region6: #{tpu_custom_call.1} parent=1 // pred_check
      _
    $region7: #{tpu_custom_call.1} parent=1 // pred_check_branch
      %12 = sbr.rel (0) target = $region9
    $region8: #{tpu_custom_call.1} parent=1 // pred_region
      %14 = vsyncadd [#allocation4], 0
      %s16 = sshll.u32 %s1, 4
      %s17 = int_to_ptr.vmem [resolvable:$true] %s16
      %19 = dma.vmem_to_smem %s17, 16, [#allocation2], [#allocation4]
    $region9: #{tpu_custom_call.1} parent=1 // pred_fallthru
      _
    // Predicated region
    $region10: #{tpu_custom_call.1} parent=1 // pred_check
      _
    $region11: #{tpu_custom_call.1} parent=1 // pred_check_branch
      %21 = sbr.rel (0) target = $region13
    $region12: #{tpu_custom_call.1} parent=1 // pred_region
      %23 = dma.done [#allocation4], 16
    $region13: #{tpu_custom_call.1} parent=1 // pred_fallthru
      _
    %24 = sfence
    %v25 = vld [vmem:[%s0] sm:$0xff]
    %vm26 = vcmp.eq.s32.totalorder %v25, 0
    %s27 = sld [smem:[#allocation2]]
    %v28 = vstv %s27
    %v29 = vsel %vm26, %v28, 0.0
    %s30 = sld [smem:[#allocation2 + $0x1]]
    %v31 = vstv %s30
    %v32 = vsel %vm26, %v31, 0.0
    %s33 = sld [smem:[#allocation2 + $0x2]]
    %v34 = vstv %s33
    %v35 = vsel %vm26, %v34, 0.0
    %s36 = sld [smem:[#allocation2 + $0x18]]
    %v37 = vstv %s36
    %v38 = vsel %vm26, %v37, 0.0
    %s39 = sld [smem:[#allocation2 + $0x19]]
    %v40 = vstv %s39
    %v41 = vsel %vm26, %v40, 0.0
    %s42 = sld [smem:[#allocation2 + $0x1a]]
    %v43 = vstv %s42
    %v44 = vsel %vm26, %v43, 0.0
    %vm45 = vcmp.eq.s32.totalorder %v25, 1
    %s46 = sld [smem:[#allocation2 + $0x3]]
    %v47 = vstv %s46
    %v48 = vsel %vm45, %v47, %v29
    %s49 = sld [smem:[#allocation2 + $0x4]]
    %v50 = vstv %s49
    %v51 = vsel %vm45, %v50, %v32
    %s52 = sld [smem:[#allocation2 + $0x5]]
    %v53 = vstv %s52
    %v54 = vsel %vm45, %v53, %v35
    %s55 = sld [smem:[#allocation2 + $0x1b]]
    %v56 = vstv %s55
    %v57 = vsel %vm45, %v56, %v38
    %s58 = sld [smem:[#allocation2 + $0x1c]]
    %v59 = vstv %s58
    %v60 = vsel %vm45, %v59, %v41
    %s61 = sld [smem:[#allocation2 + $0x1d]]
    %v62 = vstv %s61
    %v63 = vsel %vm45, %v62, %v44
    %vm64 = vcmp.eq.s32.totalorder %v25, 2
    %s65 = sld [smem:[#allocation2 + $0x6]]
    %v66 = vstv %s65
    %v67 = vsel %vm64, %v66, %v48
    %s68 = sld [smem:[#allocation2 + $0x7]]
    %v69 = vstv %s68
    %v70 = vsel %vm64, %v69, %v51
    %s71 = sld [smem:[#allocation2 + $0x8]]
    %v72 = vstv %s71
    %v73 = vsel %vm64, %v72, %v54
    %s74 = sld [smem:[#allocation2 + $0x1e]]
    %v75 = vstv %s74
    %v76 = vsel %vm64, %v75, %v57
    %s77 = sld [smem:[#allocation2 + $0x1f]]
    %v78 = vstv %s77
    %v79 = vsel %vm64, %v78, %v60
    %s80 = sld [smem:[#allocation2 + $0x20]]
    %v81 = vstv %s80
    %v82 = vsel %vm64, %v81, %v63
    %vm83 = vcmp.eq.s32.totalorder %v25, 3
    %s84 = sld [smem:[#allocation2 + $0x9]]
    %v85 = vstv %s84
    %v86 = vsel %vm83, %v85, %v67
    %s87 = sld [smem:[#allocation2 + $0xa]]
    %v88 = vstv %s87
    %v89 = vsel %vm83, %v88, %v70
    %s90 = sld [smem:[#allocation2 + $0xb]]
    %v91 = vstv %s90
    %v92 = vsel %vm83, %v91, %v73
    %s93 = sld [smem:[#allocation2 + $0x21]]
    %v94 = vstv %s93
    %v95 = vsel %vm83, %v94, %v76
    %s96 = sld [smem:[#allocation2 + $0x22]]
    %v97 = vstv %s96
    %v98 = vsel %vm83, %v97, %v79
    %s99 = sld [smem:[#allocation2 + $0x23]]
    %v100 = vstv %s99
    %v101 = vsel %vm83, %v100, %v82
    %vm102 = vcmp.eq.s32.totalorder %v25, 4
    %s103 = sld [smem:[#allocation2 + $0xc]]
    %v104 = vstv %s103
    %v105 = vsel %vm102, %v104, %v86
    %s106 = sld [smem:[#allocation2 + $0xd]]
    %v107 = vstv %s106
    %v108 = vsel %vm102, %v107, %v89
    %s109 = sld [smem:[#allocation2 + $0xe]]
    %v110 = vstv %s109
    %v111 = vsel %vm102, %v110, %v92
    %s112 = sld [smem:[#allocation2 + $0x24]]
    %v113 = vstv %s112
    %v114 = vsel %vm102, %v113, %v95
    %s115 = sld [smem:[#allocation2 + $0x25]]
    %v116 = vstv %s115
    %v117 = vsel %vm102, %v116, %v98
    %s118 = sld [smem:[#allocation2 + $0x26]]
    %v119 = vstv %s118
    %v120 = vsel %vm102, %v119, %v101
    %vm121 = vcmp.eq.s32.totalorder %v25, 5
    %s122 = sld [smem:[#allocation2 + $0xf]]
    %v123 = vstv %s122
    %v124 = vsel %vm121, %v123, %v105
    %s125 = sld [smem:[#allocation2 + $0x10]]
    %v126 = vstv %s125
    %v127 = vsel %vm121, %v126, %v108
    %s128 = sld [smem:[#allocation2 + $0x11]]
    %v129 = vstv %s128
    %v130 = vsel %vm121, %v129, %v111
    %s131 = sld [smem:[#allocation2 + $0x27]]
    %v132 = vstv %s131
    %v133 = vsel %vm121, %v132, %v114
    %s134 = sld [smem:[#allocation2 + $0x28]]
    %v135 = vstv %s134
    %v136 = vsel %vm121, %v135, %v117
    %s137 = sld [smem:[#allocation2 + $0x29]]
    %v138 = vstv %s137
    %v139 = vsel %vm121, %v138, %v120
    %vm140 = vcmp.eq.s32.totalorder %v25, 6
    %s141 = sld [smem:[#allocation2 + $0x12]]
    %v142 = vstv %s141
    %v143 = vsel %vm140, %v142, %v124
    %s144 = sld [smem:[#allocation2 + $0x13]]
    %v145 = vstv %s144
    %v146 = vsel %vm140, %v145, %v127
    %s147 = sld [smem:[#allocation2 + $0x14]]
    %v148 = vstv %s147
    %v149 = vsel %vm140, %v148, %v130
    %s150 = sld [smem:[#allocation2 + $0x2a]]
    %v151 = vstv %s150
    %v152 = vsel %vm140, %v151, %v133
    %s153 = sld [smem:[#allocation2 + $0x2b]]
    %v154 = vstv %s153
    %v155 = vsel %vm140, %v154, %v136
    %s156 = sld [smem:[#allocation2 + $0x2c]]
    %v157 = vstv %s156
    %v158 = vsel %vm140, %v157, %v139
    %vm159 = vcmp.eq.s32.totalorder %v25, 7
    %s160 = sld [smem:[#allocation2 + $0x15]]
    %v161 = vstv %s160
    %v162 = vsel %vm159, %v161, %v143
    %s163 = sld [smem:[#allocation2 + $0x16]]
    %v164 = vstv %s163
    %v165 = vsel %vm159, %v164, %v146
    %s166 = sld [smem:[#allocation2 + $0x17]]
    %v167 = vstv %s166
    %v168 = vsel %vm159, %v167, %v149
    %s169 = sld [smem:[#allocation2 + $0x2d]]
    %v170 = vstv %s169
    %v171 = vsel %vm159, %v170, %v152
    %s172 = sld [smem:[#allocation2 + $0x2e]]
    %v173 = vstv %s172
    %v174 = vsel %vm159, %v173, %v155
    %s175 = sld [smem:[#allocation2 + $0x2f]]
    %v176 = vstv %s175
    %v177 = vsel %vm159, %v176, %v158
    %s178 = sld [smem:[#allocation2 + $0x30]]
    %s179 = sld [smem:[#allocation2 + $0x31]]
    %s180 = sld [smem:[#allocation2 + $0x32]]
    %s181 = sld [smem:[#allocation2 + $0x33]]
    %s182 = sld [smem:[#allocation2 + $0x34]]
    %s183 = sld [smem:[#allocation2 + $0x35]]
    %s184 = sld [smem:[#allocation2 + $0x36]]
    %s185 = sld [smem:[#allocation2 + $0x37]]
    %s186 = sld [smem:[#allocation2 + $0x38]]
    %s187 = sld [smem:[#allocation2 + $0x39]]
    %s188 = sld [smem:[#allocation2 + $0x3a]]
    %s189 = sld [smem:[#allocation2 + $0x3b]]
    %v190 = vmul.f32 %v162, %v162
    %v191 = vmul.f32 %v165, %v165
    %v192 = vadd.f32 %v190, %v191
    %v193 = vmul.f32 %v168, %v168
    %v194 = vadd.f32 %v192, %v193
    %v195 = vrsqrt.pop %v194
    %v196 = vmul.f32 %v195, %v194
    %v197 = vmul.f32 %v196, %v195
    %v198 = vmul.f32 0.5, %v197
    %v199 = vsub.f32 1.5, %v198
    %v200 = vmul.f32 %v195, %v199
    %v201 = vmul.f32 %v194, %v200
    %vm202 = vcmp.eq.f32.partialorder %v194, inf
    %v203 = vsel %vm202, %v194, %v201
    %vm204 = vcmp.eq.f32.partialorder %v194, 0.0
    %v205 = vand.u32 %v194, 2147483648
    %v206 = vsel %vm204, %v205, %v203
    %v207 = vmul.f32 %v206, 0.5
    %v208 = vand.u32 2147483647, %v206
    %vm209 = vcmp.lt.f32.partialorder %v208, 1e-06
    %v210 = vsel %vm209, 1.0, %v206
    %v211 = vmul.f32 %v206, %v206
    %v212 = vrcp.pop 48.0
    %v213 = vmul.f32 48.0, %v212
    %v214 = vsub.f32 1.0, %v213
    %v215 = vmul.f32 %v212, %v214
    %v216 = vadd.f32 %v212, %v215
    %vm217 = vweird.f32 %v212
    %v218 = vsel %vm217, %v212, %v216
    %v219 = vmul.f32 %v211, %v218
    %v220 = vsub.f32 0.5, %v219
    %v221 = vand.u32 2147483647, %v207
    %vm222 = vcmp.le.f32.partialorder %v221, 0.7853982
    %vm223 = vcmp.lt.s32.totalorder %v207, 0
    %v224 = vand.u32 %v207, 2139095040
    %v225 = vshrl.u32 %v224, 23
    %v226 = vsub.s32 %v225, 127
    %v227 = vand.u32 2147483647, %v207
    %v228 = vand.u32 %v227, 8388607
    %v229 = vor.u32 %v228, 8388608
    %v230 = vsub.s32 0, %v229
    %v231 = vadd.s32 %v226, 1
    %vm232 = vcmp.gt.s32.totalorder %v231, 0
    %v233 = vsel %vm232, %v231, 0
    %v234 = vshrl.u32 %v233, 5
    %v235 = vand.u32 %v233, 31
    %v236 = vsub.s32 32, %v235
    %v237 = vshrl.u32 683565275, %v236
    %v238 = vshll.u32 683565275, %v235
    %v239 = vshrl.u32 2475754826, %v236
    %v240 = vor.u32 %v238, %v239
    %v241 = vshll.u32 2475754826, %v235
    %v242 = vshrl.u32 2131351028, %v236
    %v243 = vor.u32 %v241, %v242
    %v244 = vshll.u32 2131351028, %v235
    %v245 = vshrl.u32 2102212464, %v236
    %v246 = vor.u32 %v244, %v245
    %v247 = vshll.u32 2102212464, %v235
    %v248 = vshrl.u32 920167782, %v236
    %v249 = vor.u32 %v247, %v248
    %v250 = vshll.u32 920167782, %v235
    %v251 = vshrl.u32 1326507024, %v236
    %v252 = vor.u32 %v250, %v251
    %vm253 = vcmp.lt.s32.totalorder %v234, 1
    %vm254 = vcmp.lt.s32.totalorder %v234, 2
    %vm255 = vcmp.lt.s32.totalorder %v234, 3
    %vm256 = vcmp.lt.s32.totalorder %v234, 4
    %v257 = vsel %vm253, %v237, %v240
    %v258 = vsel %vm256, %v246, 2102212464
    %v259 = vsel %vm255, %v243, %v258
    %v260 = vsel %vm254, %v257, %v259
    %v261 = vsel %vm253, %v240, %v243
    %v262 = vsel %vm256, %v249, 920167782
    %v263 = vsel %vm255, %v246, %v262
    %v264 = vsel %vm254, %v261, %v263
    %v265 = vsel %vm253, %v243, %v246
    %v266 = vsel %vm256, %v252, 1326507024
    %v267 = vsel %vm255, %v249, %v266
    %v268 = vsel %vm254, %v265, %v267
    %v269 = vshll.u32 %v229, 8
    %v270 = vand.u32 %v269, 65535
    %v271 = vshrl.u32 %v269, 16
    %v272 = vand.u32 %v268, 65535
    %v273 = vshrl.u32 %v268, 16
    %v274 = vmul.u32 %v270, %v272
    %v275 = vmul.u32 %v270, %v273
    %v276 = vmul.u32 %v271, %v272
    %v277 = vmul.u32 %v271, %v273
    %v278 = vshll.u32 %v275, 16
    %v279 = vshrl.u32 %v275, 16
    %v280 = vshll.u32 %v276, 16
    %v281 = vshrl.u32 %v276, 16
    %vm282 = vc.u32 %v274, %v278
    %v283 = vsel %vm282, 1, 0
    %v284 = vadd.s32 %v274, %v278
    %v285 = vadd.s32 %v277, %v283
    %vm286 = vc.u32 %v284, %v280
    %v287 = vsel %vm286, 1, 0
    %v288 = vadd.s32 %v284, %v280
    %v289 = vadd.s32 %v285, %v287
    %v290 = vadd.s32 %v289, %v279
    %v291 = vadd.s32 %v290, %v281
    %v292 = vand.u32 %v269, 65535
    %v293 = vshrl.u32 %v269, 16
    %v294 = vand.u32 %v264, 65535
    %v295 = vshrl.u32 %v264, 16
    %v296 = vmul.u32 %v292, %v294
    %v297 = vmul.u32 %v292, %v295
    %v298 = vmul.u32 %v293, %v294
    %v299 = vmul.u32 %v293, %v295
    %v300 = vshll.u32 %v297, 16
    %v301 = vshrl.u32 %v297, 16
    %v302 = vshll.u32 %v298, 16
    %v303 = vshrl.u32 %v298, 16
    %vm304 = vc.u32 %v296, %v300
    %v305 = vsel %vm304, 1, 0
    %v306 = vadd.s32 %v296, %v300
    %v307 = vadd.s32 %v299, %v305
    %vm308 = vc.u32 %v306, %v302
    %v309 = vsel %vm308, 1, 0
    %v310 = vadd.s32 %v306, %v302
    %v311 = vadd.s32 %v307, %v309
    %v312 = vadd.s32 %v311, %v301
    %v313 = vadd.s32 %v312, %v303
    %v314 = vmul.u32 %v269, %v260
    %v315 = vadd.s32 %v291, %v310
    %vm316 = vc.u32 %v291, %v310
    %v317 = vadd.s32 %v313, 1
    %v318 = vsel %vm316, %v317, %v313
    %v319 = vadd.s32 %v314, %v318
    %v320 = vadd.s32 %v319, 536870912
    %v321 = vshrl.u32 %v320, 30
    %v322 = vshll.u32 %v321, 30
    %v323 = vsub.s32 %v319, %v322
    %vm324 = vcmp.lt.s32.totalorder %v323, 0
    %v325 = vsub.s32 0, %v323
    %v326 = vsel %vm324, %v325, %v323
    %v327 = vclz %v326
    %v328 = vsub.s32 %v327, 2
    %vm329 = vcmp.gt.s32.totalorder 0, %v328
    %v330 = vsel %vm329, 0, %v328
    %v331 = vsub.s32 32, %v330
    %v332 = vshll.u32 %v323, %v330
    %v333 = vshrl.u32 %v315, %v331
    %v334 = vor.u32 %v332, %v333
    %v335 = vsub.s32 4294967266, %v330
    %v336 = vadd.s32 %v335, 127
    %v337 = vshll.u32 %v336, 23
    %v338 = vor.u32 4788187, %v337
    %v339 = vand.u32 2147483647, %v338
    %v341 = vcvt.s32.f32 %v334
    %v342 = vmul.f32 %v341, %v339
    %v343 = vxor.u32 %v342, 2147483648
    %v344 = vsel %vm223, %v343, %v342
    %v345 = vsub.s32 4, %v321
    %v346 = vsel %vm223, %v345, %v321
    %v347 = vsel %vm222, %v207, %v344
    %v348 = vsel %vm222, 0, %v346
    %v349 = vmul.f32 %v347, %v347
    %v350 = vmul.f32 %v349, -0.001358992
    %v351 = vadd.f32 %v350, 0.041655596
    %v352 = vmul.f32 %v349, %v351
    %v353 = vadd.f32 %v352, -0.4999988
    %v354 = vmul.f32 %v349, %v353
    %v355 = vadd.f32 1.0, %v354
    %v356 = vmul.f32 %v347, %v347
    %v357 = vmul.f32 %v356, -0.00019511016
    %v358 = vadd.f32 %v357, 0.008332121
    %v359 = vmul.f32 %v356, %v358
    %v360 = vadd.f32 %v359, -0.16666654
    %v361 = vmul.f32 %v356, %v360
    %v362 = vadd.f32 %v361, 1.0
    %v363 = vmul.f32 %v362, %v347
    %vm364 = vweird.f32 %v207
    %v365 = vadd.s32 %v348, 3
    %v366 = vand.u32 %v365, 3
    %vm367 = vcmp.lt.s32.totalorder %v366, 2
    %vm368 = vcmp.eq.s32.totalorder %v366, 0
    %v369 = vxor.u32 %v363, 2147483648
    %v370 = vsel %vm368, %v355, %v369
    %vm371 = vcmp.eq.s32.totalorder %v366, 2
    %v372 = vxor.u32 %v355, 2147483648
    %v373 = vsel %vm371, %v372, %v363
    %v374 = vsel %vm367, %v370, %v373
    %v375 = vsel %vm364, nan, %v374
    %v376 = vrcp.pop %v210
    %v377 = vmul.f32 %v210, %v376
    %v378 = vsub.f32 1.0, %v377
    %v379 = vmul.f32 %v376, %v378
    %v380 = vadd.f32 %v376, %v379
    %vm381 = vweird.f32 %v210
    %vm382 = vweird.f32 %v376
    %vm383 = vmor %vm381, %vm382
    %v384 = vsel %vm383, %v376, %v380
    %v385 = vand.u32 2147483647, %v210
    %vm386 = vcmp.eq.f32.partialorder %v385, 8.507059e+37
    %v387 = vand.u32 %v210, 2147483648
    %v388 = vor.u32 1.1754944e-38, %v387
    %v389 = vsel %vm386, %v388, %v384
    %v390 = vmul.f32 %v375, %v389
    %v391 = vsel %vm209, %v220, %v390
    %v392 = vand.u32 2147483647, %v207
    %vm393 = vcmp.le.f32.partialorder %v392, 0.7853982
    %vm394 = vcmp.lt.s32.totalorder %v207, 0
    %v395 = vand.u32 %v207, 2139095040
    %v396 = vshrl.u32 %v395, 23
    %v397 = vsub.s32 %v396, 127
    %v398 = vand.u32 2147483647, %v207
    %v399 = vand.u32 %v398, 8388607
    %v400 = vor.u32 %v399, 8388608
    %v401 = vsub.s32 0, %v400
    %v402 = vadd.s32 %v397, 1
    %vm403 = vcmp.gt.s32.totalorder %v402, 0
    %v404 = vsel %vm403, %v402, 0
    %v405 = vshrl.u32 %v404, 5
    %v406 = vand.u32 %v404, 31
    %v407 = vsub.s32 32, %v406
    %v408 = vshrl.u32 683565275, %v407
    %v409 = vshll.u32 683565275, %v406
    %v410 = vshrl.u32 2475754826, %v407
    %v411 = vor.u32 %v409, %v410
    %v412 = vshll.u32 2475754826, %v406
    %v413 = vshrl.u32 2131351028, %v407
    %v414 = vor.u32 %v412, %v413
    %v415 = vshll.u32 2131351028, %v406
    %v416 = vshrl.u32 2102212464, %v407
    %v417 = vor.u32 %v415, %v416
    %v418 = vshll.u32 2102212464, %v406
    %v419 = vshrl.u32 920167782, %v407
    %v420 = vor.u32 %v418, %v419
    %v421 = vshll.u32 920167782, %v406
    %v422 = vshrl.u32 1326507024, %v407
    %v423 = vor.u32 %v421, %v422
    %vm424 = vcmp.lt.s32.totalorder %v405, 1
    %vm425 = vcmp.lt.s32.totalorder %v405, 2
    %vm426 = vcmp.lt.s32.totalorder %v405, 3
    %vm427 = vcmp.lt.s32.totalorder %v405, 4
    %v428 = vsel %vm424, %v408, %v411
    %v429 = vsel %vm427, %v417, 2102212464
    %v430 = vsel %vm426, %v414, %v429
    %v431 = vsel %vm425, %v428, %v430
    %v432 = vsel %vm424, %v411, %v414
    %v433 = vsel %vm427, %v420, 920167782
    %v434 = vsel %vm426, %v417, %v433
    %v435 = vsel %vm425, %v432, %v434
    %v436 = vsel %vm424, %v414, %v417
    %v437 = vsel %vm427, %v423, 1326507024
    %v438 = vsel %vm426, %v420, %v437
    %v439 = vsel %vm425, %v436, %v438
    %v440 = vshll.u32 %v400, 8
    %v441 = vand.u32 %v440, 65535
    %v442 = vshrl.u32 %v440, 16
    %v443 = vand.u32 %v439, 65535
    %v444 = vshrl.u32 %v439, 16
    %v445 = vmul.u32 %v441, %v443
    %v446 = vmul.u32 %v441, %v444
    %v447 = vmul.u32 %v442, %v443
    %v448 = vmul.u32 %v442, %v444
    %v449 = vshll.u32 %v446, 16
    %v450 = vshrl.u32 %v446, 16
    %v451 = vshll.u32 %v447, 16
    %v452 = vshrl.u32 %v447, 16
    %vm453 = vc.u32 %v445, %v449
    %v454 = vsel %vm453, 1, 0
    %v455 = vadd.s32 %v445, %v449
    %v456 = vadd.s32 %v448, %v454
    %vm457 = vc.u32 %v455, %v451
    %v458 = vsel %vm457, 1, 0
    %v459 = vadd.s32 %v455, %v451
    %v460 = vadd.s32 %v456, %v458
    %v461 = vadd.s32 %v460, %v450
    %v462 = vadd.s32 %v461, %v452
    %v463 = vand.u32 %v440, 65535
    %v464 = vshrl.u32 %v440, 16
    %v465 = vand.u32 %v435, 65535
    %v466 = vshrl.u32 %v435, 16
    %v467 = vmul.u32 %v463, %v465
    %v468 = vmul.u32 %v463, %v466
    %v469 = vmul.u32 %v464, %v465
    %v470 = vmul.u32 %v464, %v466
    %v471 = vshll.u32 %v468, 16
    %v472 = vshrl.u32 %v468, 16
    %v473 = vshll.u32 %v469, 16
    %v474 = vshrl.u32 %v469, 16
    %vm475 = vc.u32 %v467, %v471
    %v476 = vsel %vm475, 1, 0
    %v477 = vadd.s32 %v467, %v471
    %v478 = vadd.s32 %v470, %v476
    %vm479 = vc.u32 %v477, %v473
    %v480 = vsel %vm479, 1, 0
    %v481 = vadd.s32 %v477, %v473
    %v482 = vadd.s32 %v478, %v480
    %v483 = vadd.s32 %v482, %v472
    %v484 = vadd.s32 %v483, %v474
    %v485 = vmul.u32 %v440, %v431
    %v486 = vadd.s32 %v462, %v481
    %vm487 = vc.u32 %v462, %v481
    %v488 = vadd.s32 %v484, 1
    %v489 = vsel %vm487, %v488, %v484
    %v490 = vadd.s32 %v485, %v489
    %v491 = vadd.s32 %v490, 536870912
    %v492 = vshrl.u32 %v491, 30
    %v493 = vshll.u32 %v492, 30
    %v494 = vsub.s32 %v490, %v493
    %vm495 = vcmp.lt.s32.totalorder %v494, 0
    %v496 = vsub.s32 0, %v494
    %v497 = vsel %vm495, %v496, %v494
    %v498 = vclz %v497
    %v499 = vsub.s32 %v498, 2
    %vm500 = vcmp.gt.s32.totalorder 0, %v499
    %v501 = vsel %vm500, 0, %v499
    %v502 = vsub.s32 32, %v501
    %v503 = vshll.u32 %v494, %v501
    %v504 = vshrl.u32 %v486, %v502
    %v505 = vor.u32 %v503, %v504
    %v506 = vsub.s32 4294967266, %v501
    %v507 = vadd.s32 %v506, 127
    %v508 = vshll.u32 %v507, 23
    %v509 = vor.u32 4788187, %v508
    %v510 = vand.u32 2147483647, %v509
    %v512 = vcvt.s32.f32 %v505
    %v513 = vmul.f32 %v512, %v510
    %v514 = vxor.u32 %v513, 2147483648
    %v515 = vsel %vm394, %v514, %v513
    %v516 = vsub.s32 4, %v492
    %v517 = vsel %vm394, %v516, %v492
    %v518 = vsel %vm393, %v207, %v515
    %v519 = vsel %vm393, 0, %v517
    %v520 = vmul.f32 %v518, %v518
    %v521 = vmul.f32 %v520, -0.001358992
    %v522 = vadd.f32 %v521, 0.041655596
    %v523 = vmul.f32 %v520, %v522
    %v524 = vadd.f32 %v523, -0.4999988
    %v525 = vmul.f32 %v520, %v524
    %v526 = vadd.f32 1.0, %v525
    %v527 = vmul.f32 %v518, %v518
    %v528 = vmul.f32 %v527, -0.00019511016
    %v529 = vadd.f32 %v528, 0.008332121
    %v530 = vmul.f32 %v527, %v529
    %v531 = vadd.f32 %v530, -0.16666654
    %v532 = vmul.f32 %v527, %v531
    %v533 = vadd.f32 %v532, 1.0
    %v534 = vmul.f32 %v533, %v518
    %vm535 = vweird.f32 %v207
    %v536 = vand.u32 %v519, 3
    %vm537 = vcmp.lt.s32.totalorder %v536, 2
    %vm538 = vcmp.eq.s32.totalorder %v536, 0
    %v539 = vxor.u32 %v534, 2147483648
    %v540 = vsel %vm538, %v526, %v539
    %vm541 = vcmp.eq.s32.totalorder %v536, 2
    %v542 = vxor.u32 %v526, 2147483648
    %v543 = vsel %vm541, %v542, %v534
    %v544 = vsel %vm537, %v540, %v543
    %v545 = vsel %vm535, nan, %v544
    %v546 = vmul.f32 %v162, %v391
    %v547 = vmul.f32 %v165, %v391
    %v548 = vmul.f32 %v168, %v391
    %v549 = vmul.f32 %v545, %v545
    %v550 = vmul.f32 %v546, %v546
    %v551 = vadd.f32 %v549, %v550
    %v552 = vmul.f32 %v547, %v547
    %v553 = vadd.f32 %v551, %v552
    %v554 = vmul.f32 %v548, %v548
    %v555 = vadd.f32 %v553, %v554
    %v556 = vrcp.pop %v555
    %v557 = vmul.f32 %v555, %v556
    %v558 = vsub.f32 1.0, %v557
    %v559 = vmul.f32 %v556, %v558
    %v560 = vadd.f32 %v556, %v559
    %vm561 = vweird.f32 %v555
    %vm562 = vweird.f32 %v556
    %vm563 = vmor %vm561, %vm562
    %v564 = vsel %vm563, %v556, %v560
    %v565 = vand.u32 2147483647, %v555
    %vm566 = vcmp.eq.f32.partialorder %v565, 8.507059e+37
    %v567 = vand.u32 %v555, 2147483648
    %v568 = vor.u32 1.1754944e-38, %v567
    %v569 = vsel %vm566, %v568, %v564
    %v570 = vmul.f32 2.0, %v569
    %v571 = vadd.f32 %v552, %v554
    %v572 = vmul.f32 %v570, %v571
    %v573 = vsub.f32 1.0, %v572
    %v574 = vmul.f32 %v546, %v547
    %v575 = vmul.f32 %v548, %v545
    %v576 = vsub.f32 %v574, %v575
    %v577 = vmul.f32 %v570, %v576
    %v578 = vmul.f32 %v546, %v548
    %v579 = vmul.f32 %v547, %v545
    %v580 = vadd.f32 %v578, %v579
    %v581 = vmul.f32 %v570, %v580
    %v582 = vadd.f32 %v574, %v575
    %v583 = vmul.f32 %v570, %v582
    %v584 = vadd.f32 %v550, %v554
    %v585 = vmul.f32 %v570, %v584
    %v586 = vsub.f32 1.0, %v585
    %v587 = vmul.f32 %v547, %v548
    %v588 = vmul.f32 %v546, %v545
    %v589 = vsub.f32 %v587, %v588
    %v590 = vmul.f32 %v570, %v589
    %v591 = vsub.f32 %v578, %v579
    %v592 = vmul.f32 %v570, %v591
    %v593 = vadd.f32 %v587, %v588
    %v594 = vmul.f32 %v570, %v593
    %v595 = vadd.f32 %v550, %v552
    %v596 = vmul.f32 %v570, %v595
    %v597 = vsub.f32 1.0, %v596
    %v598 = vstv %s178
    %v599 = vmul.f32 %v573, %v598
    %v600 = vstv %s182
    %v601 = vmul.f32 %v577, %v600
    %v602 = vadd.f32 %v599, %v601
    %v603 = vstv %s186
    %v604 = vmul.f32 %v581, %v603
    %v605 = vadd.f32 %v602, %v604
    %vm606 = vcmask 7168
    %607 = vst.msk [vmem:[#allocation5] sm:$0xff] %vm606, %v605
    %v608 = vstv %s179
    %v609 = vmul.f32 %v573, %v608
    %v610 = vstv %s183
    %v611 = vmul.f32 %v577, %v610
    %v612 = vadd.f32 %v609, %v611
    %v613 = vstv %s187
    %v614 = vmul.f32 %v581, %v613
    %v615 = vadd.f32 %v612, %v614
    %617 = vrot.lane.b32.xlu0 %v615, 1
    %v618 = vpop.permute.xlu0 %617
    %vm620 = vcmask 15368
    %621 = vst.msk [vmem:[#allocation5] sm:$0xff] %vm620, %v618
    %v622 = vstv %s180
    %v623 = vmul.f32 %v573, %v622
    %v624 = vstv %s184
    %v625 = vmul.f32 %v577, %v624
    %v626 = vadd.f32 %v623, %v625
    %v627 = vstv %s188
    %v628 = vmul.f32 %v581, %v627
    %v629 = vadd.f32 %v626, %v628
    %631 = vrot.lane.b32.xlu0 %v629, 2
    %v632 = vpop.permute.xlu0 %631
    %vm634 = vcmask 23568
    %635 = vst.msk [vmem:[#allocation5] sm:$0xff] %vm634, %v632
    %v636 = vstv %s181
    %v637 = vmul.f32 %v573, %v636
    %v638 = vstv %s185
    %v639 = vmul.f32 %v577, %v638
    %v640 = vadd.f32 %v637, %v639
    %v641 = vstv %s189
    %v642 = vmul.f32 %v581, %v641
    %v643 = vadd.f32 %v640, %v642
    %v644 = vadd.f32 %v643, %v171
    %646 = vrot.lane.b32.xlu0 %v644, 3
    %v647 = vpop.permute.xlu0 %646
    %vm649 = vcmask 31768
    %650 = vst.msk [vmem:[#allocation5] sm:$0xff] %vm649, %v647
    %v651 = vmul.f32 %v583, %v598
    %v652 = vmul.f32 %v586, %v600
    %v653 = vadd.f32 %v651, %v652
    %v654 = vmul.f32 %v590, %v603
    %v655 = vadd.f32 %v653, %v654
    %657 = vrot.lane.b32.xlu0 %v655, 4
    %v658 = vpop.permute.xlu0 %657
    %vm660 = vcmask 39968
    %661 = vst.msk [vmem:[#allocation5] sm:$0xff] %vm660, %v658
    %v662 = vmul.f32 %v583, %v608
    %v663 = vmul.f32 %v586, %v610
    %v664 = vadd.f32 %v662, %v663
    %v665 = vmul.f32 %v590, %v613
    %v666 = vadd.f32 %v664, %v665
    %668 = vrot.lane.b32.xlu0 %v666, 5
    %v669 = vpop.permute.xlu0 %668
    %vm671 = vcmask 48168
    %672 = vst.msk [vmem:[#allocation5] sm:$0xff] %vm671, %v669
    %v673 = vmul.f32 %v583, %v622
    %v674 = vmul.f32 %v586, %v624
    %v675 = vadd.f32 %v673, %v674
    %v676 = vmul.f32 %v590, %v627
    %v677 = vadd.f32 %v675, %v676
    %679 = vrot.lane.b32.xlu0 %v677, 6
    %v680 = vpop.permute.xlu0 %679
    %vm682 = vcmask 56368
    %683 = vst.msk [vmem:[#allocation5] sm:$0xff] %vm682, %v680
    %v684 = vmul.f32 %v583, %v636
    %v685 = vmul.f32 %v586, %v638
    %v686 = vadd.f32 %v684, %v685
    %v687 = vmul.f32 %v590, %v641
    %v688 = vadd.f32 %v686, %v687
    %v689 = vadd.f32 %v688, %v174
    %691 = vrot.lane.b32.xlu0 %v689, 7
    %v692 = vpop.permute.xlu0 %691
    %vm694 = vcmask 64568
    %695 = vst.msk [vmem:[#allocation5] sm:$0xff] %vm694, %v692
    %v696 = vmul.f32 %v592, %v598
    %v697 = vmul.f32 %v594, %v600
    %v698 = vadd.f32 %v696, %v697
    %v699 = vmul.f32 %v597, %v603
    %v700 = vadd.f32 %v698, %v699
    %702 = vrot.lane.b32.xlu0 %v700, 8
    %v703 = vpop.permute.xlu0 %702
    %vm705 = vcmask 72768
    %706 = vst.msk [vmem:[#allocation5] sm:$0xff] %vm705, %v703
    %v707 = vmul.f32 %v592, %v608
    %v708 = vmul.f32 %v594, %v610
    %v709 = vadd.f32 %v707, %v708
    %v710 = vmul.f32 %v597, %v613
    %v711 = vadd.f32 %v709, %v710
    %713 = vrot.lane.b32.xlu0 %v711, 9
    %v714 = vpop.permute.xlu0 %713
    %vm716 = vcmask 80968
    %717 = vst.msk [vmem:[#allocation5] sm:$0xff] %vm716, %v714
    %v718 = vmul.f32 %v592, %v622
    %v719 = vmul.f32 %v594, %v624
    %v720 = vadd.f32 %v718, %v719
    %v721 = vmul.f32 %v597, %v627
    %v722 = vadd.f32 %v720, %v721
    %724 = vrot.lane.b32.xlu0 %v722, 10
    %v725 = vpop.permute.xlu0 %724
    %vm727 = vcmask 89168
    %728 = vst.msk [vmem:[#allocation5] sm:$0xff] %vm727, %v725
    %v729 = vmul.f32 %v592, %v636
    %v730 = vmul.f32 %v594, %v638
    %v731 = vadd.f32 %v729, %v730
    %v732 = vmul.f32 %v597, %v641
    %v733 = vadd.f32 %v731, %v732
    %v734 = vadd.f32 %v733, %v177
    %736 = vrot.lane.b32.xlu0 %v734, 11
    %v737 = vpop.permute.xlu0 %736
    %vm739 = vcmask 97368
    %740 = vst.msk [vmem:[#allocation5] sm:$0xff] %vm739, %v737
    %v741 = vlaneseq
    %v742 = vand.u32 %v741, 127
    %vm743 = vcmp.eq.s32.totalorder %v742, 3
    %v744 = vsel %vm743, 1, 0
    %v745 = vcvt.s32.f32 %v744
    %747 = vrot.lane.b32.xlu0 %v745, 12
    %v748 = vpop.permute.xlu0 %747
    %vm750 = vcmask 130144
    %751 = vst.msk [vmem:[#allocation5] sm:$0xff] %vm750, %v748
    // Predicated region
    $region14: #{tpu_custom_call.1} parent=1 // pred_check
      _
    $region15: #{tpu_custom_call.1} parent=1 // pred_check_branch
      %753 = sbr.rel (0) target = $region17
    $region16: #{tpu_custom_call.1} parent=1 // pred_region
      %755 = vsyncadd [#allocation3], 0
      %s757 = sshll.u32 [#allocation5], 4
      %s758 = int_to_ptr.vmem [resolvable:$true] %s757
      %s759 = sshll.u32 %s2, 4
      %s760 = int_to_ptr.hbm [resolvable:$true] %s759
      %762 = dma.vmem_to_hbm [thread:$0]  %s758, 128, %s760, [#allocation3]
    $region17: #{tpu_custom_call.1} parent=1 // pred_fallthru
      _
    // Predicated region
    $region18: #{tpu_custom_call.1} parent=1 // pred_check
      _
    $region19: #{tpu_custom_call.1} parent=1 // pred_check_branch
      %764 = sbr.rel (0) target = $region21
    $region20: #{tpu_custom_call.1} parent=1 // pred_region
      %766 = dma.done [#allocation3], 128
    $region21: #{tpu_custom_call.1} parent=1 // pred_fallthru
      _
    %767 = vsyncpa [#allocation3], 1
    %768 = vsyncpa [#allocation4], 1

</llo_original>
